<compile_context>
chip_gen: v7x
topology: tpu7x:2x2x1
jax: 0.10.0
libtpu: 0.0.40
codegen_flags: <defaults>
</compile_context>

<pallas_src>
import functools

import jax
import jax.numpy as jnp
from jax.experimental import pallas as pl
from jax.experimental.pallas import tpu as pltpu


def _round_up(x, m):
    return ((x + m - 1) // m) * m


def _downsample_kernel(y_ref, w0_ref, w1_ref, b_ref, o_ref, *, tm, halo, k1):
    """One (batch, super-row-tile) step.

    y_ref : [1, 1, (TH+1)*Wo_pad, 6C] bf16  space-to-depth slab (+1 halo super-row)
    w0_ref: [6C, Ncp] bf16  taps (dy=0,1) x (dx=0,1,2), K order = [p][dx][c]
    w1_ref: [3C, Ncp] bf16  taps (dy=2)   x (dx=0,1,2)
    b_ref : [1, Ncp]  f32   bias
    o_ref : [1, TM, Ncp] f32
    """
    # Tap block a=0 (super-row i): all 6C phases, bias folded into the store.
    a0 = y_ref[0, 0, pl.ds(0, tm), :]
    o_ref[0] = (
        jnp.dot(a0, w0_ref[...], preferred_element_type=jnp.float32) + b_ref[...]
    )
    # Tap block a=1 (super-row i+1): only the row-phase-0 prefix (first 3C
    # lanes) carries non-zero weights.  `halo` (= Wo_pad) is a static multiple
    # of 16, so this slice is sublane-tile aligned (no relayout copy).
    a1 = y_ref[0, 0, pl.ds(halo, tm), :k1]
    o_ref[0] = o_ref[0] + jnp.dot(a1, w1_ref[...], preferred_element_type=jnp.float32)


def downsample(x_nchw, weight, bias, *, tile_super_rows=None):
    """F.pad(x, (0,1,0,1)) + Conv2d(kernel=3, stride=2, padding=0).

    x_nchw: [B, C, H, W]; weight: [Cout, C, 3, 3]; bias: [Cout] -> [B, Cout, Ho, Wo] f32.
    """
    B, C, H, W = x_nchw.shape
    Cout = weight.shape[0]

    Ho = (H - 2) // 2 + 1                  # = ((H+1) - 3)//2 + 1
    Wo = (W - 2) // 2 + 1
    Wo_pad = _round_up(Wo, 16)             # bf16 sublane pitch -> aligned halo slice
    Ncp = _round_up(Cout, 128)             # lane-dense output channels

    # --- spatial tile size: TH output super-rows per grid step (~2 MiB slab tile)
    if tile_super_rows is None:
        row_bytes = Wo_pad * 6 * C * 2
        tile_super_rows = max(1, (2 * 1024 * 1024) // row_bytes)
    TH = max(1, min(Ho, int(tile_super_rows)))
    nT = -(-Ho // TH)
    Ho_pad = nT * TH
    TM = TH * Wo_pad

    # --- input layout pass (one fused XLA copy): NCHW -> NHWC bf16, zero pad,
    # 6C space-to-depth slab y[b, r, j, k], k = p*3C + dx*C + c, value
    # x_padded[2r+p, 2j+dx, c].
    He = 2 * (Ho_pad + 1)
    We = 2 * Wo_pad + 2
    x = jnp.transpose(x_nchw, (0, 2, 3, 1)).astype(jnp.bfloat16)        # [B,H,W,C]
    x = jnp.pad(x, ((0, 0), (0, He - H), (0, We - W), (0, 0)))          # incl. (0,1,0,1)
    xr = x.reshape(B, Ho_pad + 1, 2, We, C)                             # (b, r, p, col, c)
    taps = [xr[:, :, :, d:d + 2 * Wo_pad:2, :] for d in range(3)]       # (b, r, p, j, c)
    y = jnp.stack(taps, axis=3)                                         # (b, r, p, dx, j, c)
    y = jnp.transpose(y, (0, 1, 4, 2, 3, 5))                            # (b, r, j, p, dx, c)
    y = y.reshape(B, Ho_pad + 1, Wo_pad, 6 * C)

    # Per-tile halo: tile t owns super-rows [t*TH, (t+1)*TH) and additionally
    # needs super-row (t+1)*TH for the dy=2 tap -> gather TH+1 rows per tile.
    rows = jnp.arange(nT)[:, None] * TH + jnp.arange(TH + 1)[None, :]   # [nT, TH+1]
    yt = y[:, rows].reshape(B, nT, (TH + 1) * Wo_pad, 6 * C)

    # --- weights reordered to match the slab's K axis; Cout zero-padded to Ncp
    w0 = jnp.transpose(weight[:, :, 0:2, :], (2, 3, 1, 0)).reshape(6 * C, Cout)
    w1 = jnp.transpose(weight[:, :, 2, :], (2, 1, 0)).reshape(3 * C, Cout)
    w0 = jnp.pad(w0, ((0, 0), (0, Ncp - Cout))).astype(jnp.bfloat16)
    w1 = jnp.pad(w1, ((0, 0), (0, Ncp - Cout))).astype(jnp.bfloat16)
    bp = jnp.pad(bias.astype(jnp.float32), (0, Ncp - Cout)).reshape(1, Ncp)

    # --- VMEM budget (double-buffered in/out blocks, weights, f32 temps) + cost hint
    in_tile = (TH + 1) * Wo_pad * 6 * C * 2
    out_tile = TM * Ncp * 4
    w_bytes = (6 * C + 3 * C) * Ncp * 2 + Ncp * 4
    est = 2 * in_tile + 2 * out_tile + 2 * w_bytes + out_tile
    vmem_limit = int(min(56 * 2 ** 20, max(32 * 2 ** 20, 2 * est)))
    flops = 2 * B * nT * TM * (6 * C + 3 * C) * Ncp
    bytes_accessed = (yt.size * 2 + w0.size * 2 + w1.size * 2 + bp.size * 4
                      + B * Ho_pad * Wo_pad * Ncp * 4)

    kernel = functools.partial(_downsample_kernel, tm=TM, halo=Wo_pad, k1=3 * C)
    out = pl.pallas_call(
        kernel,
        out_shape=jax.ShapeDtypeStruct((B, Ho_pad * Wo_pad, Ncp), jnp.float32),
        grid=(B, nT),
        in_specs=[
            pl.BlockSpec((1, 1, (TH + 1) * Wo_pad, 6 * C), lambda b, t: (b, t, 0, 0)),
            pl.BlockSpec((6 * C, Ncp), lambda b, t: (0, 0)),   # grid-invariant: fetched once
            pl.BlockSpec((3 * C, Ncp), lambda b, t: (0, 0)),
            pl.BlockSpec((1, Ncp), lambda b, t: (0, 0)),
        ],
        out_specs=pl.BlockSpec((1, TM, Ncp), lambda b, t: (b, t, 0)),
        compiler_params=pltpu.CompilerParams(
            dimension_semantics=("parallel", "parallel"),
            vmem_limit_bytes=vmem_limit,
        ),
        cost_estimate=pl.CostEstimate(
            flops=int(flops), transcendentals=0, bytes_accessed=int(bytes_accessed)),
    )(yt, w0, w1, bp)

    out = out.reshape(B, Ho_pad, Wo_pad, Ncp)[:, :Ho, :Wo, :Cout]
    return jnp.transpose(out, (0, 3, 1, 2))                             # NCHW, f32


def _reference(x_nchw, weight, bias):
    """Pure-JAX reference: F.pad((0,1,0,1)) + Conv2d(3x3, stride=2, padding=0).

    Inputs/weights are rounded to bf16 (exactly as the kernel does) and
    accumulated in f32, so the comparison isolates structural correctness.
    bf16 rounding vs a full-f32 PyTorch Conv2d is ~1e-3 relative.
    """
    xb = x_nchw.astype(jnp.bfloat16).astype(jnp.float32)
    wb = weight.astype(jnp.bfloat16).astype(jnp.float32)
    xp = jnp.pad(xb, ((0, 0), (0, 0), (0, 1), (0, 1)))
    out = jax.lax.conv_general_dilated(
        xp, wb, window_strides=(2, 2), padding="VALID",
        dimension_numbers=("NCHW", "OIHW", "NCHW"),
        precision=jax.lax.Precision.HIGHEST)
    return out + bias.reshape(1, -1, 1, 1)


if __name__ == "__main__":
    key = jax.random.PRNGKey(0)
    k1, k2, k3 = jax.random.split(key, 3)

    B, C, H, W = 2, 4, 16, 16
    x = jax.random.normal(k1, (B, C, H, W), jnp.float32)

    # Deterministic synthetic nn.Conv2d(C, C, 3) parameters.
    fan_in = C * 3 * 3
    bound = 1.0 / (fan_in ** 0.5)
    weight = jax.random.uniform(k2, (C, C, 3, 3), jnp.float32, -bound, bound)
    bias = jax.random.uniform(k3, (C,), jnp.float32, -bound, bound)

    # tile_super_rows=4 -> 2 spatial tiles per batch element, so the halo /
    # multi-tile pipeline path is exercised even at this small size.
    y = downsample(x, weight, bias, tile_super_rows=4)
    y = jax.block_until_ready(y)

    y_ref = _reference(x, weight, bias)
    assert y.shape == (B, C, 8, 8), y.shape
    err = float(jnp.max(jnp.abs(y - y_ref)))
    assert jnp.allclose(y, y_ref, atol=2e-3, rtol=2e-3), err
    print("KERNEL_OK")
</pallas_src>

<mosaic_0001>
module attributes {stable_mosaic.version = 11 : i64} {
  func.func @_downsample_kernel(%arg0: i32, %arg1: i32, %arg2: memref<1x1x80x24xbf16, #tpu.memory_space<vmem>>, %arg3: memref<24x128xbf16, #tpu.memory_space<vmem>>, %arg4: memref<12x128xbf16, #tpu.memory_space<vmem>>, %arg5: memref<1x128xf32, #tpu.memory_space<vmem>>, %arg6: memref<1x64x128xf32, #tpu.memory_space<vmem>>) attributes {dimension_semantics = [#tpu.dimension_semantics<parallel>, #tpu.dimension_semantics<parallel>], iteration_bounds = array<i64: 2, 2>, scalar_prefetch = 0 : i64, scratch_operands = 0 : i64, tpu.core_type = #tpu.core_type<tc>, window_params = [{transform_indices = @transform_0, window_bounds = array<i64: 1, 1, 80, 24>}, {pipeline_mode = #tpu.pipeline_mode<synchronous>, transform_indices = @transform_1, window_bounds = array<i64: 24, 128>}, {pipeline_mode = #tpu.pipeline_mode<synchronous>, transform_indices = @transform_2, window_bounds = array<i64: 12, 128>}, {pipeline_mode = #tpu.pipeline_mode<synchronous>, transform_indices = @transform_3, window_bounds = array<i64: 1, 128>}, {transform_indices = @transform_4, window_bounds = array<i64: 1, 64, 128>}]} {
    %c0 = arith.constant 0 : index
    %c0_0 = arith.constant 0 : index
    %c0_1 = arith.constant 0 : index
    %c0_2 = arith.constant 0 : index
    %0 = vector.load %arg2[%c0, %c0_0, %c0_1, %c0_2] : memref<1x1x80x24xbf16, #tpu.memory_space<vmem>>, vector<1x1x64x24xbf16>
    %1 = vector.shape_cast %0 : vector<1x1x64x24xbf16> to vector<64x24xbf16>
    %c0_3 = arith.constant 0 : index
    %c0_4 = arith.constant 0 : index
    %2 = vector.load %arg3[%c0_3, %c0_4] : memref<24x128xbf16, #tpu.memory_space<vmem>>, vector<24x128xbf16>
    %cst = arith.constant dense<0.000000e+00> : vector<64x128xf32>
    %3 = tpu.matmul %1, %2, %cst {dimension_numbers = #tpu.dot_dimension_numbers<[1], [0], [0], [1], [0, 0, 1, 1], [], []>} : vector<64x24xbf16>, vector<24x128xbf16>, vector<64x128xf32> -> vector<64x128xf32>
    %c0_5 = arith.constant 0 : index
    %c0_6 = arith.constant 0 : index
    %4 = vector.load %arg5[%c0_5, %c0_6] : memref<1x128xf32, #tpu.memory_space<vmem>>, vector<1x128xf32>
    %5 = vector.broadcast %4 : vector<1x128xf32> to vector<64x128xf32>
    %6 = arith.addf %3, %5 : vector<64x128xf32>
    %c0_7 = arith.constant 0 : index
    %c0_8 = arith.constant 0 : index
    %c0_9 = arith.constant 0 : index
    %7 = vector.load %arg6[%c0_7, %c0_8, %c0_9] : memref<1x64x128xf32, #tpu.memory_space<vmem>>, vector<1x64x128xf32>
    %8 = vector.shape_cast %7 : vector<1x64x128xf32> to vector<64x128xf32>
    %9 = vector.shape_cast %6 : vector<64x128xf32> to vector<1x64x128xf32>
    tpu.vector_store %arg6[%c0_7, %c0_8, %c0_9], %9 {strides = array<i32>} : memref<1x64x128xf32, #tpu.memory_space<vmem>>, vector<1x64x128xf32>,
    %c0_10 = arith.constant 0 : index
    %c0_11 = arith.constant 0 : index
    %c16 = arith.constant 16 : index
    %c0_12 = arith.constant 0 : index
    %10 = vector.load %arg2[%c0_10, %c0_11, %c16, %c0_12] : memref<1x1x80x24xbf16, #tpu.memory_space<vmem>>, vector<1x1x64x12xbf16>
    %11 = vector.shape_cast %10 : vector<1x1x64x12xbf16> to vector<64x12xbf16>
    %c0_13 = arith.constant 0 : index
    %c0_14 = arith.constant 0 : index
    %c0_15 = arith.constant 0 : index
    %12 = vector.load %arg6[%c0_13, %c0_14, %c0_15] : memref<1x64x128xf32, #tpu.memory_space<vmem>>, vector<1x64x128xf32>
    %13 = vector.shape_cast %12 : vector<1x64x128xf32> to vector<64x128xf32>
    %c0_16 = arith.constant 0 : index
    %c0_17 = arith.constant 0 : index
    %14 = vector.load %arg4[%c0_16, %c0_17] : memref<12x128xbf16, #tpu.memory_space<vmem>>, vector<12x128xbf16>
    %cst_18 = arith.constant dense<0.000000e+00> : vector<64x128xf32>
    %15 = tpu.matmul %11, %14, %cst_18 {dimension_numbers = #tpu.dot_dimension_numbers<[1], [0], [0], [1], [0, 0, 1, 1], [], []>} : vector<64x12xbf16>, vector<12x128xbf16>, vector<64x128xf32> -> vector<64x128xf32>
    %16 = arith.addf %13, %15 : vector<64x128xf32>
    %c0_19 = arith.constant 0 : index
    %c0_20 = arith.constant 0 : index
    %c0_21 = arith.constant 0 : index
    %17 = vector.load %arg6[%c0_19, %c0_20, %c0_21] : memref<1x64x128xf32, #tpu.memory_space<vmem>>, vector<1x64x128xf32>
    %18 = vector.shape_cast %17 : vector<1x64x128xf32> to vector<64x128xf32>
    %19 = vector.shape_cast %16 : vector<64x128xf32> to vector<1x64x128xf32>
    tpu.vector_store %arg6[%c0_19, %c0_20, %c0_21], %19 {strides = array<i32>} : memref<1x64x128xf32, #tpu.memory_space<vmem>>, vector<1x64x128xf32>,
    return
  }
  func.func @transform_0(%arg0: i32, %arg1: i32) -> (i32, i32, i32, i32) {
    %c0_i32 = arith.constant 0 : i32
    %c0_i32_0 = arith.constant 0 : i32
    %c0_i32_1 = arith.constant 0 : i32
    return %arg0, %arg1, %c0_i32, %c0_i32_0 : i32, i32, i32, i32
  }
  func.func @transform_1(%arg0: i32, %arg1: i32) -> (i32, i32) {
    %c0_i32 = arith.constant 0 : i32
    %c0_i32_0 = arith.constant 0 : i32
    %c0_i32_1 = arith.constant 0 : i32
    return %c0_i32, %c0_i32_0 : i32, i32
  }
  func.func @transform_2(%arg0: i32, %arg1: i32) -> (i32, i32) {
    %c0_i32 = arith.constant 0 : i32
    %c0_i32_0 = arith.constant 0 : i32
    %c0_i32_1 = arith.constant 0 : i32
    return %c0_i32, %c0_i32_0 : i32, i32
  }
  func.func @transform_3(%arg0: i32, %arg1: i32) -> (i32, i32) {
    %c0_i32 = arith.constant 0 : i32
    %c0_i32_0 = arith.constant 0 : i32
    %c0_i32_1 = arith.constant 0 : i32
    return %c0_i32, %c0_i32_0 : i32, i32
  }
  func.func @transform_4(%arg0: i32, %arg1: i32) -> (i32, i32, i32) {
    %c0_i32 = arith.constant 0 : i32
    %c0_i32_0 = arith.constant 0 : i32
    return %arg0, %arg1, %c0_i32 : i32, i32, i32
  }
}

</mosaic_0001>

<llo_original>
// kernel: tpu_custom_call.1
$region0: #{tpu_custom_call.1}
  #allocation0 [shape = 'u32[]', space=smem, size = 0x4, offset = 0x4, fixed_abs, tag = 'smem constant byte address 0x4 - core index']
  #allocation1 [shape = 'u32[144,128]{1,0:T(1,128)}', space=vmem, size = 0x12000, scoped, tag = 'internal scratch']
  %s0 = inlined_call_operand.vmem [shape: bf16[2,2,80,24], index: 0, kind: input, shape index: {}]
  %s1 = inlined_call_operand.vmem [shape: bf16[24,128], index: 1, kind: input, shape index: {}]
  %s2 = inlined_call_operand.vmem [shape: bf16[12,128], index: 2, kind: input, shape index: {}]
  %s3 = inlined_call_operand.vmem [shape: f32[1,128], index: 3, kind: input, shape index: {}]
  %s4 = inlined_call_operand.hbm [shape: f32[2,128,128], index: 4, kind: output, shape index: {}]
  %s5 = sld [smem:[#allocation0]]
  $region49: #{tpu_custom_call.1} parent=0
    _
  %s7 = ssub.s32 1, %s5
  %s8 = scalar_select 0, %s7, %s5
  $region1: #{tpu_custom_call.1} parent=0
    #allocation2 [shape = 'u8[65536]{0}', space=vmem, size = 0x10000, scoped, tag = 'output window, operand 0']
    #allocation3 [shape = 's32[2]{0}', space=sflag, size = 0x8, scoped, tag = 'scoped memory for tpu_custom_call.1']
    %9 = vsyncpa [#allocation3], 0
    %s10 = scalar_lea.sflag [#allocation3], 1
    %11 = vsyncpa %s10, 0
    loop: start=0, step=1, limit=6
    $region2: #{tpu_custom_call.1} parent=1 // loop_pre_header
      _
    $region3: #{tpu_custom_call.1} parent=1 // loop_header
      %s13 = sphi 0, %s17
      %p14 = scmp.ge.s32.totalorder %s13, 6
      %s20 = sphi 0, %s32
      %s21 = sphi 0, %s28
      %s22 = sphi 0, %s20
      %s23 = sphi 0, %s21
      %s24 = sphi 0, %s22
      %s25 = sphi 0, %s23
      %s37 = sphi 0, %s39
      %s40 = sphi 0, %s37
      %s41 = sphi 0, %s40
      %s57 = sphi 0, %s41
      %s61 = sphi 0, %s61
      %s63 = sphi 0, %s61
      %s64 = sphi 0, %s63
      %s78 = sphi 0, %s64
      %s82 = sphi 0, %s82
      %s84 = sphi 0, %s82
      %s85 = sphi 0, %s84
      %s99 = sphi 0, %s85
      %s103 = sphi 0, %s103
      %s105 = sphi 0, %s103
      %s106 = sphi 0, %s105
      %s120 = sphi 0, %s106
      %s128 = sphi 0, %s130
      %s131 = sphi 0, %s128
      %s132 = sphi 0, %s131
      %s148 = sphi 0, %s132
    $region4: #{tpu_custom_call.1} parent=1 // loop_header_branch
      %16 = sbr.rel (%p14) target = $region8
    $region5: #{tpu_custom_call.1} parent=1 // loop_body
      %s18 = ssub.s32 %s13, 1
      %s19 = ssub.s32 %s13, 2
      %s26 = sadd.s32 1, %s21
      %p27 = scmp.ge.s32.totalorder %s26, 2
      %s28 = scalar_select %p27, 0, %s26
      %s29 = sadd.s32 1, %s20
      %s30 = scalar_select %p27, %s29, %s20
      %p31 = scmp.ge.s32.totalorder %s30, 2
      %s32 = scalar_select %p31, 0, %s30
      %s33 = ssub.s32 %s20, %s32
      %s34 = ssub.s32 %s21, %s28
      %s35 = sor.u32 %s33, %s34
      %p36 = scmp.eq.s32.totalorder %s35, 0
      %s38 = sadd.s32 %s37, 1
      %s39 = scalar_select %p36, %s37, %s38
      %p42 = pneg %p36
      %p43 = scmp.eq.s32.totalorder %s13, 3
      %p44 = por %p42, %p43
      %p45 = scmp.ne.s32.totalorder %s37, %s40
      %p46 = scmp.eq.s32.totalorder %s13, 0
      %p47 = por %p45, %p46
      %p48 = scmp.ne.s32.totalorder %s37, %s40
      %p49 = scmp.eq.s32.totalorder %s18, 3
      %p50 = por %p48, %p49
      %p51 = scmp.ne.s32.totalorder %s40, %s41
      %p52 = scmp.eq.s32.totalorder %s18, 0
      %p53 = por %p51, %p52
      %p54 = scmp.ne.s32.totalorder %s40, %s41
      %p55 = scmp.eq.s32.totalorder %s19, 3
      %p56 = por %p54, %p55
      %p58 = scmp.ne.s32.totalorder %s41, %s57
      %p59 = scmp.eq.s32.totalorder %s19, 0
      %p60 = por %p58, %p59
      %s62 = sadd.s32 %s61, 1
      %p65 = scmp.eq.s32.totalorder %s13, 3
      %p66 = scmp.ne.s32.totalorder %s61, %s63
      %p67 = scmp.eq.s32.totalorder %s13, 0
      %p68 = por %p66, %p67
      %p69 = scmp.ne.s32.totalorder %s61, %s63
      %p70 = scmp.eq.s32.totalorder %s18, 3
      %p71 = por %p69, %p70
      %p72 = scmp.ne.s32.totalorder %s63, %s64
      %p73 = scmp.eq.s32.totalorder %s18, 0
      %p74 = por %p72, %p73
      %p75 = scmp.ne.s32.totalorder %s63, %s64
      %p76 = scmp.eq.s32.totalorder %s19, 3
      %p77 = por %p75, %p76
      %p79 = scmp.ne.s32.totalorder %s64, %s78
      %p80 = scmp.eq.s32.totalorder %s19, 0
      %p81 = por %p79, %p80
      %s83 = sadd.s32 %s82, 1
      %p86 = scmp.eq.s32.totalorder %s13, 3
      %p87 = scmp.ne.s32.totalorder %s82, %s84
      %p88 = scmp.eq.s32.totalorder %s13, 0
      %p89 = por %p87, %p88
      %p90 = scmp.ne.s32.totalorder %s82, %s84
      %p91 = scmp.eq.s32.totalorder %s18, 3
      %p92 = por %p90, %p91
      %p93 = scmp.ne.s32.totalorder %s84, %s85
      %p94 = scmp.eq.s32.totalorder %s18, 0
      %p95 = por %p93, %p94
      %p96 = scmp.ne.s32.totalorder %s84, %s85
      %p97 = scmp.eq.s32.totalorder %s19, 3
      %p98 = por %p96, %p97
      %p100 = scmp.ne.s32.totalorder %s85, %s99
      %p101 = scmp.eq.s32.totalorder %s19, 0
      %p102 = por %p100, %p101
      %s104 = sadd.s32 %s103, 1
      %p107 = scmp.eq.s32.totalorder %s13, 3
      %p108 = scmp.ne.s32.totalorder %s103, %s105
      %p109 = scmp.eq.s32.totalorder %s13, 0
      %p110 = por %p108, %p109
      %p111 = scmp.ne.s32.totalorder %s103, %s105
      %p112 = scmp.eq.s32.totalorder %s18, 3
      %p113 = por %p111, %p112
      %p114 = scmp.ne.s32.totalorder %s105, %s106
      %p115 = scmp.eq.s32.totalorder %s18, 0
      %p116 = por %p114, %p115
      %p117 = scmp.ne.s32.totalorder %s105, %s106
      %p118 = scmp.eq.s32.totalorder %s19, 3
      %p119 = por %p117, %p118
      %p121 = scmp.ne.s32.totalorder %s106, %s120
      %p122 = scmp.eq.s32.totalorder %s19, 0
      %p123 = por %p121, %p122
      %s124 = ssub.s32 %s20, %s32
      %s125 = ssub.s32 %s21, %s28
      %s126 = sor.u32 %s124, %s125
      %p127 = scmp.eq.s32.totalorder %s126, 0
      %s129 = sadd.s32 %s128, 1
      %s130 = scalar_select %p127, %s128, %s129
      %p133 = pneg %p127
      %p134 = scmp.eq.s32.totalorder %s13, 3
      %p135 = por %p133, %p134
      %p136 = scmp.ne.s32.totalorder %s128, %s131
      %p137 = scmp.eq.s32.totalorder %s13, 0
      %p138 = por %p136, %p137
      %p139 = scmp.ne.s32.totalorder %s128, %s131
      %p140 = scmp.eq.s32.totalorder %s18, 3
      %p141 = por %p139, %p140
      %p142 = scmp.ne.s32.totalorder %s131, %s132
      %p143 = scmp.eq.s32.totalorder %s18, 0
      %p144 = por %p142, %p143
      %p145 = scmp.ne.s32.totalorder %s131, %s132
      %p146 = scmp.eq.s32.totalorder %s19, 3
      %p147 = por %p145, %p146
      %p149 = scmp.ne.s32.totalorder %s132, %s148
      %p150 = scmp.eq.s32.totalorder %s19, 0
      %p151 = por %p149, %p150
      %p152 = scmp.le.s32.totalorder 1, %s13
      %p153 = scmp.lt.s32.totalorder %s13, 5
      %p154 = pnand %p152, %p153
      %p155 = pneg %p154
      // Predicated region
      $region9: #{tpu_custom_call.1} parent=5 // pred_check
        _
      $region10: #{tpu_custom_call.1} parent=5 // pred_check_branch
        %157 = sbr.rel (%p154) target = $region12
      $region11: #{tpu_custom_call.1} parent=5 // pred_region
        %s158 = ssub.s32 %s13, 1
        // Predicated region
        $region13: #{tpu_custom_call.1} parent=11 // pred_check
          %p159 = pneg %p74
        $region14: #{tpu_custom_call.1} parent=11 // pred_check_branch
          %161 = sbr.rel (%p159) target = $region16
        $region15: #{tpu_custom_call.1} parent=11 // pred_region
          _
        $region16: #{tpu_custom_call.1} parent=11 // pred_fallthru
          _
        // Predicated region
        $region17: #{tpu_custom_call.1} parent=11 // pred_check
          %p162 = pneg %p95
        $region18: #{tpu_custom_call.1} parent=11 // pred_check_branch
          %164 = sbr.rel (%p162) target = $region20
        $region19: #{tpu_custom_call.1} parent=11 // pred_region
          _
        $region20: #{tpu_custom_call.1} parent=11 // pred_fallthru
          _
        // Predicated region
        $region21: #{tpu_custom_call.1} parent=11 // pred_check
          %p165 = pneg %p116
        $region22: #{tpu_custom_call.1} parent=11 // pred_check_branch
          %167 = sbr.rel (%p165) target = $region24
        $region23: #{tpu_custom_call.1} parent=11 // pred_region
          _
        $region24: #{tpu_custom_call.1} parent=11 // pred_fallthru
          _
      $region12: #{tpu_custom_call.1} parent=5 // pred_fallthru
        _
      %p168 = scmp.lt.s32.totalorder %s13, 4
      // Predicated region
      $region25: #{tpu_custom_call.1} parent=5 // pred_check
        %p169 = pneg %p168
      $region26: #{tpu_custom_call.1} parent=5 // pred_check_branch
        %171 = sbr.rel (%p169) target = $region28
      $region27: #{tpu_custom_call.1} parent=5 // pred_region
        // Predicated region
        $region29: #{tpu_custom_call.1} parent=27 // pred_check
          %p172 = pneg %p47
        $region30: #{tpu_custom_call.1} parent=27 // pred_check_branch
          %174 = sbr.rel (%p172) target = $region32
        $region31: #{tpu_custom_call.1} parent=27 // pred_region
          %p175 = scmp.lt.s32.totalorder %s20, 1
          %s176 = scalar_select %p175, %s20, 1
          %p177 = scmp.lt.s32.totalorder %s21, 1
          %s178 = scalar_select %p177, %s21, 1
          %s179 = smul.addr %s178, 10
          %s180 = smul.addr %s176, 20
          %s181 = sadd.s32 %s179, %s180
          %s182 = smul.addr %s181, 4
          %s183 = scalar_lea.vmem %s0, %s182
        $region32: #{tpu_custom_call.1} parent=27 // pred_fallthru
          _
      $region28: #{tpu_custom_call.1} parent=5 // pred_fallthru
        _
      %p184 = scmp.le.s32.totalorder 1, %s13
      %p185 = scmp.lt.s32.totalorder %s13, 5
      %p186 = pnand %p184, %p185
      %p187 = pneg %p186
      // Predicated region
      $region33: #{tpu_custom_call.1} parent=5 // pred_check
        _
      $region34: #{tpu_custom_call.1} parent=5 // pred_check_branch
        %189 = sbr.rel (%p186) target = $region36
      $region35: #{tpu_custom_call.1} parent=5 // pred_region
        %s190 = ssub.s32 %s13, 1
        %p191 = scmp.lt.s32.totalorder %s22, 1
        %s192 = scalar_select %p191, %s22, 1
        %p193 = scmp.lt.s32.totalorder %s23, 1
        %s194 = scalar_select %p193, %s23, 1
        %s195 = smul.addr %s194, 10
        %s196 = smul.addr %s192, 20
        %s197 = sadd.s32 %s195, %s196
        %s198 = smul.addr %s197, 4
        %s199 = scalar_lea.vmem %s0, %s198
        %p200 = pneg %p53
        %p201 = pneg %p50
        %p202 = pneg %p74
        %p203 = pneg %p71
        %p204 = pneg %p95
        %p205 = pneg %p92
        %p206 = pneg %p116
        %p207 = pneg %p113
        %p208 = pneg %p144
        %p209 = pneg %p141
        %s210 = sand.u32 %s131, 1
        %s211 = scalar_lea.sflag [#allocation3], %s210
        %s212 = sand.u32 %s131, 1
        %s213 = smul.addr %s212, 64
        %s214 = scalar_lea.vmem [#allocation2], %s213
        %p215 = scmp.lt.s32.totalorder %s22, 1
        %s216 = scalar_select %p215, %s22, 1
        %p217 = scmp.lt.s32.totalorder %s23, 1
        %s218 = scalar_select %p217, %s23, 1
        %s219 = smul.addr %s218, 10
        %s220 = smul.addr %s216, 20
        %s221 = sadd.s32 %s219, %s220
        %s222 = smul.addr %s221, 4
        %s223 = scalar_lea.vmem %s0, %s222
        %s224 = smul.u32 8, %s23
        %v226 = vld [vmem:[%s223] sm:$0xf]
        %v227 = vld [vmem:[%s223 + $0x4] sm:$0xf]
        %v228 = vld [vmem:[%s223 + $0x8] sm:$0xf]
        %v229 = vld [vmem:[%s223 + $0xc] sm:$0xf]
        %v230 = vld [vmem:[%s223 + $0x10] sm:$0xf]
        %v231 = vld [vmem:[%s223 + $0x14] sm:$0xf]
        %v232 = vld [vmem:[%s223 + $0x18] sm:$0xf]
        %v233 = vld [vmem:[%s223 + $0x1c] sm:$0xf]
        %v234 = vld [vmem:[%s1] sm:$0xf]
        %v235 = vld [vmem:[%s1 + $0x4] sm:$0xf]
        %v236 = vld [vmem:[%s1 + $0x8] sm:$0xf]
        %v237 = vld [vmem:[%s3] sm:$0x1]
        %v239 = vlaneseq
        %v240 = vshrl.u32 %v239, 7
        %v241 = vsub.s32 0, %v240
        %v242 = vrot.slane %v237, %v241
        %v252 = vunpack.c.l.b16 %v226
        %v253 = vunpack.c.l.b16 %v227
        %v254 = vunpack.c.l.b16 %v228
        %v255 = vunpack.c.l.b16 %v229
        %v256 = vunpack.c.l.b16 %v230
        %v257 = vunpack.c.l.b16 %v231
        %v258 = vunpack.c.l.b16 %v232
        %v259 = vunpack.c.l.b16 %v233
        %v260 = vpack.c.b16 %v253, %v252
        %v261 = vpack.c.b16 %v255, %v254
        %v262 = vpack.c.b16 %v257, %v256
        %v263 = vpack.c.b16 %v259, %v258
        %v267 = vunpack.c.l.b16 %v234
        %v268 = vunpack.c.l.b16 %v235
        %v269 = vunpack.c.l.b16 %v236
        %v270 = vpack.c.b16 %v268, %v267
        %v271 = vpack.c.b16 %v269, %v269
        %vm273 = vcmask 195584
        %v275 = vsel %vm273, %v260, 0
        %v278 = vsel %vm273, %v261, 0
        %v281 = vsel %vm273, %v262, 0
        %v284 = vsel %vm273, %v263, 0
        %vm286 = vcmask 1043456
        %v288 = vsel %vm286, %v271, 0
        %290 = vmatprep.subr.bf16.mxu0 0
        %291 = vmatpush1.bf16.msra.mxu0 %v270
        %292 = vmatprep.subr.bf16.mxu0 0
        %293 = vmatpush1.bf16.msra.mxu0 %v288
        %294 = vmatprep.subr.bf16.mxu0 0
        %295 = vmatpush1.bf16.msra.mxu0 0
        %296 = vmatprep.subr.bf16.mxu0 0
        %297 = vmatpush1.bf16.msra.mxu0 0
        %298 = vmatprep.subr.bf16.mxu0 0
        %299 = vmatpush1.bf16.msra.mxu0 0
        %300 = vmatprep.subr.bf16.mxu0 0
        %301 = vmatpush1.bf16.msra.mxu0 0
        %302 = vmatprep.subr.bf16.mxu0 0
        %303 = vmatpush1.bf16.msra.mxu0 0
        %304 = vmatprep.subr.bf16.mxu0 0
        %305 = vmatpush1.bf16.msra.mxu0 0
        %306 = vmatprep.subr.bf16.mxu0 0
        %307 = vmatpush1.bf16.msra.mxu0 0
        %308 = vmatprep.subr.bf16.mxu0 0
        %309 = vmatpush1.bf16.msra.mxu0 0
        %310 = vmatprep.subr.bf16.mxu0 0
        %311 = vmatpush1.bf16.msra.mxu0 0
        %312 = vmatprep.subr.bf16.mxu0 0
        %313 = vmatpush1.bf16.msra.mxu0 0
        %314 = vmatprep.subr.bf16.mxu0 0
        %315 = vmatpush1.bf16.msra.mxu0 0
        %316 = vmatprep.subr.bf16.mxu0 0
        %317 = vmatpush1.bf16.msra.mxu0 0
        %318 = vmatprep.subr.bf16.mxu0 0
        %319 = vmatpush1.bf16.msra.mxu0 0
        %320 = vmatprep.subr.bf16.mxu0 0
        %321 = vmatpush1.bf16.msra.mxu0 0
        %322 = vmatprep.mubr.bf16.mxu0 0
        %323 = vmatmul.mubr.bf16.gmra.mrb[0].mxu0 %v275
        %v324 = vpop.f32.mrb[0].mxu0
        %v325 = vadd.f32 %v242, %v324
        %v326 = vpop.f32.mrb[0].mxu0
        %v327 = vpop.f32.mrb[0].mxu0
        %v328 = vadd.f32 %v242, %v327
        %v329 = vpop.f32.mrb[0].mxu0
        %330 = vmatprep.mubr.bf16.mxu0 0
        %331 = vmatmul.mubr.bf16.gmra.mrb[0].mxu0 %v278
        %v332 = vpop.f32.mrb[0].mxu0
        %v333 = vadd.f32 %v242, %v332
        %v334 = vpop.f32.mrb[0].mxu0
        %v335 = vpop.f32.mrb[0].mxu0
        %v336 = vadd.f32 %v242, %v335
        %v337 = vpop.f32.mrb[0].mxu0
        %338 = vmatprep.mubr.bf16.mxu0 0
        %339 = vmatmul.mubr.bf16.gmra.mrb[0].mxu0 %v281
        %v340 = vpop.f32.mrb[0].mxu0
        %v341 = vadd.f32 %v242, %v340
        %v342 = vpop.f32.mrb[0].mxu0
        %v343 = vpop.f32.mrb[0].mxu0
        %v344 = vadd.f32 %v242, %v343
        %v345 = vpop.f32.mrb[0].mxu0
        %346 = vmatprep.mubr.bf16.mxu0 0
        %347 = vmatmul.mubr.bf16.gmra.mrb[0].mxu0 %v284
        %v348 = vpop.f32.mrb[0].mxu0
        %v349 = vadd.f32 %v242, %v348
        %v350 = vpop.f32.mrb[0].mxu0
        %v351 = vpop.f32.mrb[0].mxu0
        %v352 = vadd.f32 %v242, %v351
        %v353 = vpop.f32.mrb[0].mxu0
        %354 = vdwg.mxu0
        %355 = vst [vmem:[%s214] sm:$0xff] %v325
        %356 = vst [vmem:[%s214 + $0x8] sm:$0xff] %v328
        %357 = vst [vmem:[%s214 + $0x10] sm:$0xff] %v333
        %358 = vst [vmem:[%s214 + $0x18] sm:$0xff] %v336
        %359 = vst [vmem:[%s214 + $0x20] sm:$0xff] %v341
        %360 = vst [vmem:[%s214 + $0x28] sm:$0xff] %v344
        %361 = vst [vmem:[%s214 + $0x30] sm:$0xff] %v349
        %362 = vst [vmem:[%s214 + $0x38] sm:$0xff] %v352
        %v363 = vld [vmem:[%s223 + $0x8] sm:$0xf]
        %v364 = vld [vmem:[%s223 + $0xc] sm:$0xf]
        %v365 = vld [vmem:[%s223 + $0x10] sm:$0xf]
        %v366 = vld [vmem:[%s223 + $0x14] sm:$0xf]
        %v367 = vld [vmem:[%s223 + $0x18] sm:$0xf]
        %v368 = vld [vmem:[%s223 + $0x1c] sm:$0xf]
        %v369 = vld [vmem:[%s223 + $0x20] sm:$0xf]
        %v370 = vld [vmem:[%s223 + $0x24] sm:$0xf]
        %v371 = vld [vmem:[%s214] sm:$0xff]
        %v372 = vld [vmem:[%s214 + $0x8] sm:$0xff]
        %v373 = vld [vmem:[%s214 + $0x10] sm:$0xff]
        %v374 = vld [vmem:[%s214 + $0x18] sm:$0xff]
        %v375 = vld [vmem:[%s214 + $0x20] sm:$0xff]
        %v376 = vld [vmem:[%s214 + $0x28] sm:$0xff]
        %v377 = vld [vmem:[%s214 + $0x30] sm:$0xff]
        %v378 = vld [vmem:[%s214 + $0x38] sm:$0xff]
        %v379 = vld [vmem:[%s2] sm:$0xf]
        %v380 = vld [vmem:[%s2 + $0x4] sm:$0x3]
        %v389 = vunpack.c.l.b16 %v363
        %v390 = vunpack.c.l.b16 %v364
        %v391 = vunpack.c.l.b16 %v365
        %v392 = vunpack.c.l.b16 %v366
        %v393 = vunpack.c.l.b16 %v367
        %v394 = vunpack.c.l.b16 %v368
        %v395 = vunpack.c.l.b16 %v369
        %v396 = vunpack.c.l.b16 %v370
        %v397 = vpack.c.b16 %v390, %v389
        %v398 = vpack.c.b16 %v392, %v391
        %v399 = vpack.c.b16 %v394, %v393
        %v400 = vpack.c.b16 %v396, %v395
        %v403 = vunpack.c.l.b16 %v379
        %v404 = vunpack.c.l.b16 %v380
        %v405 = vpack.c.b16 %v404, %v403
        %vm406 = vcmask 97280
        %v408 = vsel %vm406, %v397, 0
        %v411 = vsel %vm406, %v398, 0
        %v414 = vsel %vm406, %v399, 0
        %v417 = vsel %vm406, %v400, 0
        %vm419 = vcmask 1045504
        %v421 = vsel %vm419, %v405, 0
        %423 = vmatprep.subr.bf16.mxu0 0
        %424 = vmatpush1.bf16.msra.mxu0 %v421
        %425 = vmatprep.subr.bf16.mxu0 0
        %426 = vmatpush1.bf16.msra.mxu0 0
        %427 = vmatprep.subr.bf16.mxu0 0
        %428 = vmatpush1.bf16.msra.mxu0 0
        %429 = vmatprep.subr.bf16.mxu0 0
        %430 = vmatpush1.bf16.msra.mxu0 0
        %431 = vmatprep.subr.bf16.mxu0 0
        %432 = vmatpush1.bf16.msra.mxu0 0
        %433 = vmatprep.subr.bf16.mxu0 0
        %434 = vmatpush1.bf16.msra.mxu0 0
        %435 = vmatprep.subr.bf16.mxu0 0
        %436 = vmatpush1.bf16.msra.mxu0 0
        %437 = vmatprep.subr.bf16.mxu0 0
        %438 = vmatpush1.bf16.msra.mxu0 0
        %439 = vmatprep.subr.bf16.mxu0 0
        %440 = vmatpush1.bf16.msra.mxu0 0
        %441 = vmatprep.subr.bf16.mxu0 0
        %442 = vmatpush1.bf16.msra.mxu0 0
        %443 = vmatprep.subr.bf16.mxu0 0
        %444 = vmatpush1.bf16.msra.mxu0 0
        %445 = vmatprep.subr.bf16.mxu0 0
        %446 = vmatpush1.bf16.msra.mxu0 0
        %447 = vmatprep.subr.bf16.mxu0 0
        %448 = vmatpush1.bf16.msra.mxu0 0
        %449 = vmatprep.subr.bf16.mxu0 0
        %450 = vmatpush1.bf16.msra.mxu0 0
        %451 = vmatprep.subr.bf16.mxu0 0
        %452 = vmatpush1.bf16.msra.mxu0 0
        %453 = vmatprep.subr.bf16.mxu0 0
        %454 = vmatpush1.bf16.msra.mxu0 0
        %455 = vmatprep.mubr.bf16.mxu0 0
        %456 = vmatmul.mubr.bf16.gmra.mrb[0].mxu0 %v408
        %v457 = vpop.f32.mrb[0].mxu0
        %v458 = vadd.f32 0.0, %v457
        %v459 = vpop.f32.mrb[0].mxu0
        %v460 = vpop.f32.mrb[0].mxu0
        %v461 = vadd.f32 0.0, %v460
        %v462 = vpop.f32.mrb[0].mxu0
        %463 = vmatprep.mubr.bf16.mxu0 0
        %464 = vmatmul.mubr.bf16.gmra.mrb[0].mxu0 %v411
        %v465 = vpop.f32.mrb[0].mxu0
        %v466 = vadd.f32 0.0, %v465
        %v467 = vpop.f32.mrb[0].mxu0
        %v468 = vpop.f32.mrb[0].mxu0
        %v469 = vadd.f32 0.0, %v468
        %v470 = vpop.f32.mrb[0].mxu0
        %471 = vmatprep.mubr.bf16.mxu0 0
        %472 = vmatmul.mubr.bf16.gmra.mrb[0].mxu0 %v414
        %v473 = vpop.f32.mrb[0].mxu0
        %v474 = vadd.f32 0.0, %v473
        %v475 = vpop.f32.mrb[0].mxu0
        %v476 = vpop.f32.mrb[0].mxu0
        %v477 = vadd.f32 0.0, %v476
        %v478 = vpop.f32.mrb[0].mxu0
        %479 = vmatprep.mubr.bf16.mxu0 0
        %480 = vmatmul.mubr.bf16.gmra.mrb[0].mxu0 %v417
        %v481 = vpop.f32.mrb[0].mxu0
        %v482 = vadd.f32 0.0, %v481
        %v483 = vpop.f32.mrb[0].mxu0
        %v484 = vpop.f32.mrb[0].mxu0
        %v485 = vadd.f32 0.0, %v484
        %v486 = vpop.f32.mrb[0].mxu0
        %487 = vdwg.mxu0
        %v488 = vadd.f32 %v371, %v458
        %v489 = vadd.f32 %v372, %v461
        %v490 = vadd.f32 %v373, %v466
        %v491 = vadd.f32 %v374, %v469
        %v492 = vadd.f32 %v375, %v474
        %v493 = vadd.f32 %v376, %v477
        %v494 = vadd.f32 %v377, %v482
        %v495 = vadd.f32 %v378, %v485
        %496 = vst [vmem:[%s214] sm:$0xff] %v488
        %497 = vst [vmem:[%s214 + $0x8] sm:$0xff] %v489
        %498 = vst [vmem:[%s214 + $0x10] sm:$0xff] %v490
        %499 = vst [vmem:[%s214 + $0x18] sm:$0xff] %v491
        %500 = vst [vmem:[%s214 + $0x20] sm:$0xff] %v492
        %501 = vst [vmem:[%s214 + $0x28] sm:$0xff] %v493
        %502 = vst [vmem:[%s214 + $0x30] sm:$0xff] %v494
        %503 = vst [vmem:[%s214 + $0x38] sm:$0xff] %v495
        %s504 = sand.u32 %s131, 1
        %s505 = scalar_lea.sflag [#allocation3], %s504
        %s506 = sand.u32 %s131, 1
        %s507 = smul.addr %s506, 64
        %s508 = scalar_lea.vmem [#allocation2], %s507
        // Predicated region
        $region37: #{tpu_custom_call.1} parent=35 // pred_check
          %p509 = pneg %p141
        $region38: #{tpu_custom_call.1} parent=35 // pred_check_branch
          %511 = sbr.rel (%p509) target = $region40
        $region39: #{tpu_custom_call.1} parent=35 // pred_region
          %s512 = smul.u32 8, %s23
          %s514 = ssub.s32 1024, 1024
          %515 = vsyncadd %s505, %s514
          %s516 = smul.addr %s22, 16
          %s517 = sadd.s32 %s512, %s516
          %s518 = smul.addr %s517, 128
          %s519 = scalar_lea.hbm %s4, %s518
          %s520 = sshll.u32 %s508, 4
          %s521 = int_to_ptr.vmem [resolvable:$true] %s520
          %526 = dma.vmem_to_hbm [thread:$0]  %s521, 1024, %s519, %s505, 128, 128, 8
        $region40: #{tpu_custom_call.1} parent=35 // pred_fallthru
          _
      $region36: #{tpu_custom_call.1} parent=5 // pred_fallthru
        _
      %p527 = scmp.le.s32.totalorder 2, %s13
      // Predicated region
      $region41: #{tpu_custom_call.1} parent=5 // pred_check
        %p528 = pneg %p527
      $region42: #{tpu_custom_call.1} parent=5 // pred_check_branch
        %530 = sbr.rel (%p528) target = $region44
      $region43: #{tpu_custom_call.1} parent=5 // pred_region
        %s531 = ssub.s32 %s13, 2
        // Predicated region
        $region45: #{tpu_custom_call.1} parent=43 // pred_check
          %p532 = pneg %p147
        $region46: #{tpu_custom_call.1} parent=43 // pred_check_branch
          %534 = sbr.rel (%p532) target = $region48
        $region47: #{tpu_custom_call.1} parent=43 // pred_region
          %s535 = sand.u32 %s132, 1
          %s536 = scalar_lea.sflag [#allocation3], %s535
          %s537 = sand.u32 %s132, 1
          %s538 = smul.addr %s537, 64
          %s539 = scalar_lea.vmem [#allocation2], %s538
          %540 = dma.done %s536, 1024
        $region48: #{tpu_custom_call.1} parent=43 // pred_fallthru
          _
      $region44: #{tpu_custom_call.1} parent=5 // pred_fallthru
        _
    $region6: #{tpu_custom_call.1} parent=1 // loop_footer
      %s17 = sadd.s32 1, %s13
    $region7: #{tpu_custom_call.1} parent=1 // loop_footer_branch
      %12 = sbr.rel target = $region3
    $region8: #{tpu_custom_call.1} parent=1 // loop_exit
      _
    %541 = vsyncpa [#allocation3], 1
    %s542 = scalar_lea.sflag [#allocation3], 1
    %543 = vsyncpa %s542, 1

</llo_original>
